<compile_context>
chip_gen: v5e
topology: v5e:2x2
jax: 0.10.0
libtpu: 0.0.40
codegen_flags: <defaults>
</compile_context>

<pallas_src>
import jax
import jax.numpy as jnp
from jax.experimental import pallas as pl
from jax.experimental.pallas import tpu as pltpu


# ---------------------------------------------------------------------------
# Tunables (chosen so double-buffered in+out blocks fit every chip's VMEM).
# ---------------------------------------------------------------------------
_FUSED_MAX_BYTES_PER_ARRAY = 1 << 20      # arrays <= 1 MiB go in the fused call
_FUSED_MAX_TOTAL_BYTES = 8 << 20          # total VMEM-resident bytes for fused call
_TILE_ROWS = 512                          # rows per block for the tiled copy
_TILE_LANES = 512                         # lane width (multiple of 128)
_VMEM_LIMIT_BYTES = 32 * 1024 * 1024      # safe on v5e/v6e (128 MiB) and v7x (64 MiB)


# ---------------------------------------------------------------------------
# Kernels
# ---------------------------------------------------------------------------
def _fused_copy_kernel(*refs):
    """N inputs followed by N outputs; copy each input tile to its output."""
    n = len(refs) // 2
    for i in range(n):  # unrolled at trace time
        refs[n + i][...] = refs[i][...]


def _copy_block_kernel(x_ref, o_ref):
    """Single-tile identity copy (used by the tiled / pipelined path)."""
    o_ref[...] = x_ref[...]


# ---------------------------------------------------------------------------
# Wrappers
# ---------------------------------------------------------------------------
def _pick_lanes(n: int) -> int:
    """Largest convenient lane-dense width (multiple of 128) that divides n."""
    for c in (2048, 1024, 512, 256, 128):
        if n >= c and n % c == 0:
            return c
    return 128


def _fused_identity_copy(arrays):
    """One pallas_call copying several small arrays through lane-dense views."""
    views, meta = [], []
    for x in arrays:
        lanes = _pick_lanes(x.size)
        flat = x.reshape(-1)
        pad = (-x.size) % lanes
        if pad:
            flat = jnp.pad(flat, (0, pad))
        views.append(flat.reshape(-1, lanes))
        meta.append((x.size, x.shape))

    outs = pl.pallas_call(
        _fused_copy_kernel,
        out_shape=tuple(jax.ShapeDtypeStruct(v.shape, v.dtype) for v in views),
        compiler_params=pltpu.CompilerParams(vmem_limit_bytes=_VMEM_LIMIT_BYTES),
    )(*views)

    return [o.reshape(-1)[:n].reshape(shape)
            for o, (n, shape) in zip(outs, meta)]


def _tiled_identity_copy(x, *, tile_rows=_TILE_ROWS, lanes=_TILE_LANES):
    """Tiled, pipelined identity copy for large arrays.

    The array is flattened, padded to a whole number of (tile_rows, lanes)
    blocks (lane-dense last dim), copied block-by-block over a 'parallel'
    grid axis (so v7x can split the DMA stream over both TensorCores), then
    reshaped back to the original shape.
    """
    shape = x.shape
    n = x.size
    flat = x.reshape(-1)
    pad = (-n) % (lanes * tile_rows)
    if pad:
        flat = jnp.pad(flat, (0, pad))
    v = flat.reshape(-1, lanes)
    rows = v.shape[0]

    out = pl.pallas_call(
        _copy_block_kernel,
        out_shape=jax.ShapeDtypeStruct(v.shape, v.dtype),
        grid=(rows // tile_rows,),
        in_specs=[pl.BlockSpec((tile_rows, lanes), lambda i: (i, 0))],
        out_specs=pl.BlockSpec((tile_rows, lanes), lambda i: (i, 0)),
        compiler_params=pltpu.CompilerParams(
            dimension_semantics=("parallel",),
            vmem_limit_bytes=_VMEM_LIMIT_BYTES,
        ),
    )(v)

    return out.reshape(-1)[:n].reshape(shape)


def identity_mapper_forward(**kwargs):
    """JAX equivalent of IdentityMapper.forward(**kwargs).

    The module is a pure pass-through, so the fastest (and recommended)
    implementation is to return the kwargs unchanged: no HBM read+write,
    no per-kwarg kernel-launch overhead.
    """
    return dict(kwargs)


def identity_mapper_forward_pallas(**kwargs):
    """IdentityMapper.forward with an explicit on-device Pallas copy.

    Only use this when a custom-call boundary / fresh output buffers are
    required; otherwise prefer `identity_mapper_forward`.  Array kwargs are
    copied on device (small ones fused into a single pallas_call, large ones
    tiled & pipelined); non-array kwargs pass through in Python.
    """
    out = dict(kwargs)
    fused_names, fused_arrays, fused_bytes = [], [], 0

    for name, value in kwargs.items():
        if not isinstance(value, jax.Array) or value.size == 0:
            continue  # non-tensor / empty kwargs pass through unchanged
        nbytes = value.size * value.dtype.itemsize
        if (nbytes <= _FUSED_MAX_BYTES_PER_ARRAY
                and fused_bytes + nbytes <= _FUSED_MAX_TOTAL_BYTES):
            fused_names.append(name)
            fused_arrays.append(value)
            fused_bytes += nbytes
        else:
            out[name] = _tiled_identity_copy(value)

    if fused_arrays:
        for name, copy in zip(fused_names, _fused_identity_copy(fused_arrays)):
            out[name] = copy

    return out


if __name__ == "__main__":
    key = jax.random.PRNGKey(0)
    k1, k2, k3 = jax.random.split(key, 3)

    # Small, representative kwargs (e.g. what a NeRF pipeline might pass).
    image = jax.random.normal(k1, (2, 4, 16, 16), dtype=jnp.float32)   # NCHW
    rays = jax.random.normal(k2, (2, 8, 32), dtype=jnp.float32)
    mask = (jax.random.uniform(k3, (2, 16, 16)) > 0.5).astype(jnp.float32)

    # 1) Recommended path: true pass-through (zero copies, zero launches).
    passthrough = identity_mapper_forward(image=image, rays=rays, mask=mask,
                                          tag="identity")
    assert passthrough["image"] is image
    assert passthrough["rays"] is rays
    assert passthrough["mask"] is mask
    assert passthrough["tag"] == "identity"

    # 2) Device-copy path: one fused, lane-dense Pallas identity kernel.
    result = identity_mapper_forward_pallas(image=image, rays=rays, mask=mask,
                                            tag="identity")
    jax.block_until_ready(
        [v for v in result.values() if isinstance(v, jax.Array)]
    )

    assert result["image"].shape == image.shape and result["image"].dtype == image.dtype
    assert result["rays"].shape == rays.shape and result["rays"].dtype == rays.dtype
    assert result["mask"].shape == mask.shape and result["mask"].dtype == mask.dtype
    assert bool(jnp.all(result["image"] == image))
    assert bool(jnp.all(result["rays"] == rays))
    assert bool(jnp.all(result["mask"] == mask))
    assert result["tag"] == "identity"

    # 3) Exercise the tiled/pipelined path (grid > 1, 'parallel' axis) with
    #    small tile parameters so demo shapes stay tiny.
    tiled_image = _tiled_identity_copy(image, tile_rows=8, lanes=128)
    jax.block_until_ready(tiled_image)
    assert tiled_image.shape == image.shape
    assert bool(jnp.all(tiled_image == image))

    print("KERNEL_OK")
</pallas_src>

<mosaic_0001>
module attributes {stable_mosaic.version = 11 : i64} {
  func.func @_fused_copy_kernel(%arg0: memref<1x2048xf32, #tpu.memory_space<vmem>>, %arg1: memref<1x512xf32, #tpu.memory_space<vmem>>, %arg2: memref<1x512xf32, #tpu.memory_space<vmem>>, %arg3: memref<1x2048xf32, #tpu.memory_space<vmem>>, %arg4: memref<1x512xf32, #tpu.memory_space<vmem>>, %arg5: memref<1x512xf32, #tpu.memory_space<vmem>>) attributes {dimension_semantics = [], scalar_prefetch = 0 : i64, scratch_operands = 0 : i64, tpu.core_type = #tpu.core_type<tc>} {
    %c0 = arith.constant 0 : index
    %c0_0 = arith.constant 0 : index
    %0 = vector.load %arg0[%c0, %c0_0] : memref<1x2048xf32, #tpu.memory_space<vmem>>, vector<1x2048xf32>
    %c0_1 = arith.constant 0 : index
    %c0_2 = arith.constant 0 : index
    %1 = vector.load %arg3[%c0_1, %c0_2] : memref<1x2048xf32, #tpu.memory_space<vmem>>, vector<1x2048xf32>
    tpu.vector_store %arg3[%c0_1, %c0_2], %0 {strides = array<i32>} : memref<1x2048xf32, #tpu.memory_space<vmem>>, vector<1x2048xf32>,
    %c0_3 = arith.constant 0 : index
    %c0_4 = arith.constant 0 : index
    %2 = vector.load %arg1[%c0_3, %c0_4] : memref<1x512xf32, #tpu.memory_space<vmem>>, vector<1x512xf32>
    %c0_5 = arith.constant 0 : index
    %c0_6 = arith.constant 0 : index
    %3 = vector.load %arg4[%c0_5, %c0_6] : memref<1x512xf32, #tpu.memory_space<vmem>>, vector<1x512xf32>
    tpu.vector_store %arg4[%c0_5, %c0_6], %2 {strides = array<i32>} : memref<1x512xf32, #tpu.memory_space<vmem>>, vector<1x512xf32>,
    %c0_7 = arith.constant 0 : index
    %c0_8 = arith.constant 0 : index
    %4 = vector.load %arg2[%c0_7, %c0_8] : memref<1x512xf32, #tpu.memory_space<vmem>>, vector<1x512xf32>
    %c0_9 = arith.constant 0 : index
    %c0_10 = arith.constant 0 : index
    %5 = vector.load %arg5[%c0_9, %c0_10] : memref<1x512xf32, #tpu.memory_space<vmem>>, vector<1x512xf32>
    tpu.vector_store %arg5[%c0_9, %c0_10], %4 {strides = array<i32>} : memref<1x512xf32, #tpu.memory_space<vmem>>, vector<1x512xf32>,
    return
  }
}

</mosaic_0001>

<llo_original>
// kernel: tpu_custom_call.1
$region0: #{tpu_custom_call.1}
  #allocation0 [shape = 'u32[]', space=smem, size = 0x4, offset = 0x4, fixed_abs, tag = 'smem constant byte address 0x4 - core index']
  #allocation1 [shape = 'u32[72,128]{1,0:T(1,128)}', space=vmem, size = 0x9000, scoped, tag = 'internal scratch']
  %s0 = inlined_call_operand.hbm [shape: f32[1,2048], index: 0, kind: input, shape index: {}]
  %s1 = inlined_call_operand.hbm [shape: f32[1,512], index: 1, kind: input, shape index: {}]
  %s2 = inlined_call_operand.hbm [shape: f32[1,512], index: 2, kind: input, shape index: {}]
  %s3 = inlined_call_operand.hbm [shape: f32[1,2048], index: 3, kind: output, shape index: {0}]
  %s4 = inlined_call_operand.hbm [shape: f32[1,512], index: 4, kind: output, shape index: {1}]
  %s5 = inlined_call_operand.hbm [shape: f32[1,512], index: 5, kind: output, shape index: {2}]
  %6 = xla_tuple %s3, %s4, %s5
  %s7 = sld [smem:[#allocation0]]
  $region50: #{tpu_custom_call.1} parent=0
    _
  %s9 = ssub.s32 1, %s7
  %s10 = scalar_select 0, %s9, %s7
  $region1: #{tpu_custom_call.1} parent=0
    #allocation2 [shape = 'u8[8192]{0}', space=vmem, size = 0x2000, scoped, tag = 'input window, operand 0, single buffered']
    #allocation3 [shape = 's32[1]{0}', space=sflag, size = 0x4, scoped, tag = 'scoped memory for tpu_custom_call.1']
    #allocation4 [shape = 's32[1]{0}', space=sflag, size = 0x4, scoped, tag = 'scoped memory for tpu_custom_call.1']
    #allocation5 [shape = 'u8[2048]{0}', space=vmem, size = 0x800, scoped, tag = 'input window, operand 1, single buffered']
    #allocation6 [shape = 's32[1]{0}', space=sflag, size = 0x4, scoped, tag = 'scoped memory for tpu_custom_call.1']
    #allocation7 [shape = 'u8[2048]{0}', space=vmem, size = 0x800, scoped, tag = 'input window, operand 2, single buffered']
    #allocation8 [shape = 'u8[8192]{0}', space=vmem, size = 0x2000, scoped, tag = 'output window, operand 0, single buffered']
    #allocation9 [shape = 'u8[2048]{0}', space=vmem, size = 0x800, scoped, tag = 'output window, operand 1, single buffered']
    #allocation10 [shape = 's32[1]{0}', space=sflag, size = 0x4, scoped, tag = 'scoped memory for tpu_custom_call.1']
    #allocation11 [shape = 'u8[2048]{0}', space=vmem, size = 0x800, scoped, tag = 'output window, operand 2, single buffered']
    %11 = vsyncpa [#allocation3], 0
    %12 = vsyncpa [#allocation6], 0
    %13 = vsyncpa [#allocation4], 0
    %14 = vsyncpa [#allocation10], 0
    // Predicated region
    $region2: #{tpu_custom_call.1} parent=1 // pred_check
      _
    $region3: #{tpu_custom_call.1} parent=1 // pred_check_branch
      %16 = sbr.rel (0) target = $region5
    $region4: #{tpu_custom_call.1} parent=1 // pred_region
      %18 = vsyncadd [#allocation3], 0
      %s20 = sshll.u32 %s0, 4
      %s21 = int_to_ptr.hbm [resolvable:$true] %s20
      %s22 = sshll.u32 [#allocation2], 4
      %s23 = int_to_ptr.vmem [resolvable:$true] %s22
      %25 = dma.hbm_to_vmem [thread:$0]  %s21, 256, %s23, [#allocation3]
    $region5: #{tpu_custom_call.1} parent=1 // pred_fallthru
      _
    // Predicated region
    $region6: #{tpu_custom_call.1} parent=1 // pred_check
      _
    $region7: #{tpu_custom_call.1} parent=1 // pred_check_branch
      %27 = sbr.rel (0) target = $region9
    $region8: #{tpu_custom_call.1} parent=1 // pred_region
      %29 = vsyncadd [#allocation6], 0
      %s31 = sshll.u32 %s1, 4
      %s32 = int_to_ptr.hbm [resolvable:$true] %s31
      %s33 = sshll.u32 [#allocation5], 4
      %s34 = int_to_ptr.vmem [resolvable:$true] %s33
      %36 = dma.hbm_to_vmem [thread:$0]  %s32, 64, %s34, [#allocation6]
    $region9: #{tpu_custom_call.1} parent=1 // pred_fallthru
      _
    // Predicated region
    $region10: #{tpu_custom_call.1} parent=1 // pred_check
      _
    $region11: #{tpu_custom_call.1} parent=1 // pred_check_branch
      %38 = sbr.rel (0) target = $region13
    $region12: #{tpu_custom_call.1} parent=1 // pred_region
      %40 = vsyncadd [#allocation6], 0
      %s42 = sshll.u32 %s2, 4
      %s43 = int_to_ptr.hbm [resolvable:$true] %s42
      %s44 = sshll.u32 [#allocation7], 4
      %s45 = int_to_ptr.vmem [resolvable:$true] %s44
      %47 = dma.hbm_to_vmem [thread:$0]  %s43, 64, %s45, [#allocation6]
    $region13: #{tpu_custom_call.1} parent=1 // pred_fallthru
      _
    // Predicated region
    $region14: #{tpu_custom_call.1} parent=1 // pred_check
      _
    $region15: #{tpu_custom_call.1} parent=1 // pred_check_branch
      %49 = sbr.rel (0) target = $region17
    $region16: #{tpu_custom_call.1} parent=1 // pred_region
      %51 = dma.done [#allocation3], 256
    $region17: #{tpu_custom_call.1} parent=1 // pred_fallthru
      _
    // Predicated region
    $region18: #{tpu_custom_call.1} parent=1 // pred_check
      _
    $region19: #{tpu_custom_call.1} parent=1 // pred_check_branch
      %53 = sbr.rel (0) target = $region21
    $region20: #{tpu_custom_call.1} parent=1 // pred_region
      %55 = dma.done [#allocation6], 64
    $region21: #{tpu_custom_call.1} parent=1 // pred_fallthru
      _
    // Predicated region
    $region22: #{tpu_custom_call.1} parent=1 // pred_check
      _
    $region23: #{tpu_custom_call.1} parent=1 // pred_check_branch
      %57 = sbr.rel (0) target = $region25
    $region24: #{tpu_custom_call.1} parent=1 // pred_region
      %59 = dma.done [#allocation6], 64
    $region25: #{tpu_custom_call.1} parent=1 // pred_fallthru
      _
    %v60 = vld [vmem:[#allocation2] sm:$0xff]
    %v61 = vld [vmem:[#allocation2 + $0x8] sm:$0xff]
    %62 = vst [vmem:[#allocation8] sm:$0xff] %v60
    %63 = vst [vmem:[#allocation8 + $0x8] sm:$0xff] %v61
    %v64 = vld [vmem:[#allocation5] sm:$0xf]
    %v65 = vlaneseq
    %vm66 = vcmp.ge.s32.totalorder %v65, 0
    %vm67 = vcmp.lt.s32.totalorder %v65, 512
    %vm68 = vmand %vm66, %vm67
    %69 = vst.msk [vmem:[#allocation9] sm:$0xf] %vm68, %v64
    %v70 = vld [vmem:[#allocation7] sm:$0xf]
    %71 = vst.msk [vmem:[#allocation11] sm:$0xf] %vm68, %v70
    // Predicated region
    $region26: #{tpu_custom_call.1} parent=1 // pred_check
      _
    $region27: #{tpu_custom_call.1} parent=1 // pred_check_branch
      %73 = sbr.rel (0) target = $region29
    $region28: #{tpu_custom_call.1} parent=1 // pred_region
      %75 = vsyncadd [#allocation4], 0
      %s77 = sshll.u32 [#allocation8], 4
      %s78 = int_to_ptr.vmem [resolvable:$true] %s77
      %s79 = sshll.u32 %s3, 4
      %s80 = int_to_ptr.hbm [resolvable:$true] %s79
      %82 = dma.vmem_to_hbm [thread:$0]  %s78, 256, %s80, [#allocation4]
    $region29: #{tpu_custom_call.1} parent=1 // pred_fallthru
      _
    // Predicated region
    $region30: #{tpu_custom_call.1} parent=1 // pred_check
      _
    $region31: #{tpu_custom_call.1} parent=1 // pred_check_branch
      %84 = sbr.rel (0) target = $region33
    $region32: #{tpu_custom_call.1} parent=1 // pred_region
      %86 = vsyncadd [#allocation10], 0
      %s88 = sshll.u32 [#allocation9], 4
      %s89 = int_to_ptr.vmem [resolvable:$true] %s88
      %s90 = sshll.u32 %s4, 4
      %s91 = int_to_ptr.hbm [resolvable:$true] %s90
      %93 = dma.vmem_to_hbm [thread:$0]  %s89, 64, %s91, [#allocation10]
    $region33: #{tpu_custom_call.1} parent=1 // pred_fallthru
      _
    // Predicated region
    $region34: #{tpu_custom_call.1} parent=1 // pred_check
      _
    $region35: #{tpu_custom_call.1} parent=1 // pred_check_branch
      %95 = sbr.rel (0) target = $region37
    $region36: #{tpu_custom_call.1} parent=1 // pred_region
      %97 = vsyncadd [#allocation10], 0
      %s99 = sshll.u32 [#allocation11], 4
      %s100 = int_to_ptr.vmem [resolvable:$true] %s99
      %s101 = sshll.u32 %s5, 4
      %s102 = int_to_ptr.hbm [resolvable:$true] %s101
      %104 = dma.vmem_to_hbm [thread:$0]  %s100, 64, %s102, [#allocation10]
    $region37: #{tpu_custom_call.1} parent=1 // pred_fallthru
      _
    // Predicated region
    $region38: #{tpu_custom_call.1} parent=1 // pred_check
      _
    $region39: #{tpu_custom_call.1} parent=1 // pred_check_branch
      %106 = sbr.rel (0) target = $region41
    $region40: #{tpu_custom_call.1} parent=1 // pred_region
      %108 = dma.done [#allocation4], 256
    $region41: #{tpu_custom_call.1} parent=1 // pred_fallthru
      _
    // Predicated region
    $region42: #{tpu_custom_call.1} parent=1 // pred_check
      _
    $region43: #{tpu_custom_call.1} parent=1 // pred_check_branch
      %110 = sbr.rel (0) target = $region45
    $region44: #{tpu_custom_call.1} parent=1 // pred_region
      %112 = dma.done [#allocation10], 64
    $region45: #{tpu_custom_call.1} parent=1 // pred_fallthru
      _
    // Predicated region
    $region46: #{tpu_custom_call.1} parent=1 // pred_check
      _
    $region47: #{tpu_custom_call.1} parent=1 // pred_check_branch
      %114 = sbr.rel (0) target = $region49
    $region48: #{tpu_custom_call.1} parent=1 // pred_region
      %116 = dma.done [#allocation10], 64
    $region49: #{tpu_custom_call.1} parent=1 // pred_fallthru
      _
    %117 = vsyncpa [#allocation3], 1
    %118 = vsyncpa [#allocation6], 1
    %119 = vsyncpa [#allocation4], 1
    %120 = vsyncpa [#allocation10], 1

</llo_original>
